<compile_context>
chip_gen: v7x
topology: tpu7x:2x2x1
jax: 0.10.0
libtpu: 0.0.40
codegen_flags: <defaults>
</compile_context>

<pallas_src>
import numpy as np
import jax
import jax.numpy as jnp
from jax.experimental import pallas as pl
from jax.experimental.pallas import tpu as pltpu


def interp_matrix(L_in, L_out):
    """Linear interpolation matrix (L_out, L_in), align_corners=True."""
    if L_in == 1:
        return np.ones((L_out, 1), dtype=np.float32)
    src = np.arange(L_out, dtype=np.float64) * (L_in - 1) / (L_out - 1)
    i0 = np.clip(np.floor(src).astype(np.int64), 0, L_in - 1)
    i1 = np.minimum(i0 + 1, L_in - 1)
    frac = (src - i0).astype(np.float32)
    A = np.zeros((L_out, L_in), dtype=np.float32)
    A[np.arange(L_out), i0] += (1.0 - frac)
    A[np.arange(L_out), i1] += frac
    return A


# ------------------------- fused Pallas kernel -------------------------

def _upblock_kernel(kw_ref, x_ref, khw_ref, b_ref, enc_ref, o_ref):
    # Stage 1: fused 1x1x1 conv + depth (D) upsample.
    #   kron(W, Ad): (C_out*D2, C_in*D) @ x: (C_in*D, H*W) -> (C_out*D2, H*W)
    #   bf16 operands, f32 accumulation; M = C_out*D2 = 128 sublanes.
    y = jnp.dot(kw_ref[...], x_ref[0], preferred_element_type=jnp.float32)

    # Stage 2: H/W upsample.
    #   (C_out*D2, H*W) @ kron(Ah, Aw).T: (H*W, H2*W2) -> (C_out*D2, H2*W2)
    z = jnp.dot(y.astype(jnp.bfloat16), khw_ref[...],
                preferred_element_type=jnp.float32)

    # Conv bias commutes through align_corners interpolation (rows sum to 1),
    # so add it here together with the encoder residual (free VPU work).
    o_ref[0] = (z + b_ref[...] + enc_ref[0]).astype(o_ref.dtype)


def upblock_forward(x, enc, conv_w, conv_b):
    """x: (N, C_in, D, H, W), enc: (N, C_out, 2D, 2H, 2W) -> (N, C_out, 2D, 2H, 2W)."""
    Nb, C_in, D, H, W = x.shape
    C_out = conv_w.shape[0]
    D2, H2, W2 = 2 * D, 2 * H, 2 * W

    # Fused conv + depth-upsample operator kron(W2d, Ad): (C_out*D2, C_in*D).
    Ad = jnp.asarray(interp_matrix(D, D2))                         # (D2, D)
    w2d = conv_w.reshape(C_out, C_in).astype(jnp.float32)
    kw = (w2d[:, None, :, None] * Ad[None, :, None, :]).reshape(C_out * D2, C_in * D)
    kw = kw.astype(jnp.bfloat16)

    # H/W upsample operator, transposed so the output spatial axis is in lanes.
    khw_np = np.kron(interp_matrix(H, H2), interp_matrix(W, W2)).T  # (H*W, H2*W2)
    khw = jnp.asarray(khw_np, dtype=jnp.bfloat16)

    # Bias as a (C_out*D2, 1) column (b[c] repeated over d2 rows), kept f32.
    b_col = jnp.repeat(conv_b.astype(jnp.float32), D2)[:, None]

    # Pure reshapes (no transposes, no padded copies); x halved to bf16.
    x_r = x.reshape(Nb, C_in * D, H * W).astype(jnp.bfloat16)
    enc_r = enc.reshape(Nb, C_out * D2, H2 * W2)

    out = pl.pallas_call(
        _upblock_kernel,
        grid=(Nb,),
        in_specs=[
            pl.BlockSpec((C_out * D2, C_in * D), lambda n: (0, 0)),      # kw (resident)
            pl.BlockSpec((1, C_in * D, H * W), lambda n: (n, 0, 0)),     # x tile
            pl.BlockSpec((H * W, H2 * W2), lambda n: (0, 0)),            # khw (resident)
            pl.BlockSpec((C_out * D2, 1), lambda n: (0, 0)),             # bias
            pl.BlockSpec((1, C_out * D2, H2 * W2), lambda n: (n, 0, 0)), # enc tile
        ],
        out_specs=pl.BlockSpec((1, C_out * D2, H2 * W2), lambda n: (n, 0, 0)),
        out_shape=jax.ShapeDtypeStruct((Nb, C_out * D2, H2 * W2), x.dtype),
        compiler_params=pltpu.CompilerParams(
            dimension_semantics=("parallel",),
            vmem_limit_bytes=32 * 1024 * 1024),
    )(kw, x_r, khw, b_col, enc_r)

    return out.reshape(Nb, C_out, D2, H2, W2)


# ------------------------- reference & test -------------------------

def reference(x, enc, conv_w, conv_b):
    C_out, C_in = conv_w.shape[0], conv_w.shape[1]
    hi = jax.lax.Precision.HIGHEST
    y = jnp.einsum('ncdhw,oc->nodhw', x, conv_w.reshape(C_out, C_in),
                   precision=hi) + conv_b[None, :, None, None, None]
    D, H, W = x.shape[2], x.shape[3], x.shape[4]
    Ad = jnp.asarray(interp_matrix(D, 2 * D))
    Ah = jnp.asarray(interp_matrix(H, 2 * H))
    Aw = jnp.asarray(interp_matrix(W, 2 * W))
    z = jnp.einsum('nodhw,Dd,Hh,Ww->noDHW', y, Ad, Ah, Aw, precision=hi)
    return z + enc


if __name__ == "__main__":
    key = jax.random.PRNGKey(0)
    k1, k2, k3, k4 = jax.random.split(key, 4)

    Nb, C_in, C_out = 2, 8, 8
    D = H = W = 8

    x = jax.random.normal(k1, (Nb, C_in, D, H, W), jnp.float32)
    enc = jax.random.normal(k2, (Nb, C_out, 2 * D, 2 * H, 2 * W), jnp.float32)
    # PyTorch Conv3d weight layout is (C_out, C_in, 1, 1, 1).
    conv_w = jax.random.normal(k3, (C_out, C_in, 1, 1, 1), jnp.float32) * 0.1
    conv_b = jax.random.normal(k4, (C_out,), jnp.float32) * 0.1

    fwd = jax.jit(upblock_forward)
    out = jax.block_until_ready(fwd(x, enc, conv_w, conv_b))
    ref = jax.block_until_ready(reference(x, enc, conv_w, conv_b))

    assert out.shape == ref.shape == (Nb, C_out, 2 * D, 2 * H, 2 * W)
    err = float(jnp.max(jnp.abs(out - ref)))
    if err < 2e-2:
        print("KERNEL_OK")
    else:
        print(f"max_abs_err={err}")
</pallas_src>

<mosaic_0001>
module attributes {stable_mosaic.version = 11 : i64} {
  func.func @_upblock_kernel(%arg0: i32, %arg1: memref<128x64xbf16, #tpu.memory_space<vmem>>, %arg2: memref<1x64x64xbf16, #tpu.memory_space<vmem>>, %arg3: memref<64x256xbf16, #tpu.memory_space<vmem>>, %arg4: memref<128x1xf32, #tpu.memory_space<vmem>>, %arg5: memref<1x128x256xf32, #tpu.memory_space<vmem>>, %arg6: memref<1x128x256xf32, #tpu.memory_space<vmem>>) attributes {dimension_semantics = [#tpu.dimension_semantics<parallel>], iteration_bounds = array<i64: 2>, scalar_prefetch = 0 : i64, scratch_operands = 0 : i64, tpu.core_type = #tpu.core_type<tc>, window_params = [{pipeline_mode = #tpu.pipeline_mode<synchronous>, transform_indices = @transform_0, window_bounds = array<i64: 128, 64>}, {transform_indices = @transform_1, window_bounds = array<i64: 1, 64, 64>}, {pipeline_mode = #tpu.pipeline_mode<synchronous>, transform_indices = @transform_2, window_bounds = array<i64: 64, 256>}, {pipeline_mode = #tpu.pipeline_mode<synchronous>, transform_indices = @transform_3, window_bounds = array<i64: 128, 1>}, {transform_indices = @transform_4, window_bounds = array<i64: 1, 128, 256>}, {transform_indices = @transform_5, window_bounds = array<i64: 1, 128, 256>}]} {
    %c0 = arith.constant 0 : index
    %c0_0 = arith.constant 0 : index
    %0 = vector.load %arg1[%c0, %c0_0] : memref<128x64xbf16, #tpu.memory_space<vmem>>, vector<128x64xbf16>
    %c0_1 = arith.constant 0 : index
    %c0_2 = arith.constant 0 : index
    %c0_3 = arith.constant 0 : index
    %1 = vector.load %arg2[%c0_1, %c0_2, %c0_3] : memref<1x64x64xbf16, #tpu.memory_space<vmem>>, vector<1x64x64xbf16>
    %2 = vector.shape_cast %1 : vector<1x64x64xbf16> to vector<64x64xbf16>
    %cst = arith.constant dense<0.000000e+00> : vector<128x64xf32>
    %3 = tpu.matmul %0, %2, %cst {dimension_numbers = #tpu.dot_dimension_numbers<[1], [0], [0], [1], [0, 0, 1, 1], [], []>} : vector<128x64xbf16>, vector<64x64xbf16>, vector<128x64xf32> -> vector<128x64xf32>
    %4 = arith.truncf %3 : vector<128x64xf32> to vector<128x64xbf16>
    %c0_4 = arith.constant 0 : index
    %c0_5 = arith.constant 0 : index
    %5 = vector.load %arg3[%c0_4, %c0_5] : memref<64x256xbf16, #tpu.memory_space<vmem>>, vector<64x256xbf16>
    %cst_6 = arith.constant dense<0.000000e+00> : vector<128x256xf32>
    %6 = tpu.matmul %4, %5, %cst_6 {dimension_numbers = #tpu.dot_dimension_numbers<[1], [0], [0], [1], [0, 0, 1, 1], [], []>} : vector<128x64xbf16>, vector<64x256xbf16>, vector<128x256xf32> -> vector<128x256xf32>
    %c0_7 = arith.constant 0 : index
    %c0_8 = arith.constant 0 : index
    %7 = vector.load %arg4[%c0_7, %c0_8] : memref<128x1xf32, #tpu.memory_space<vmem>>, vector<128x1xf32>
    %8 = vector.broadcast %7 : vector<128x1xf32> to vector<128x256xf32>
    %9 = arith.addf %6, %8 : vector<128x256xf32>
    %c0_9 = arith.constant 0 : index
    %c0_10 = arith.constant 0 : index
    %c0_11 = arith.constant 0 : index
    %10 = vector.load %arg5[%c0_9, %c0_10, %c0_11] : memref<1x128x256xf32, #tpu.memory_space<vmem>>, vector<1x128x256xf32>
    %11 = vector.shape_cast %10 : vector<1x128x256xf32> to vector<128x256xf32>
    %12 = arith.addf %9, %11 : vector<128x256xf32>
    %c0_12 = arith.constant 0 : index
    %c0_13 = arith.constant 0 : index
    %c0_14 = arith.constant 0 : index
    %13 = vector.load %arg6[%c0_12, %c0_13, %c0_14] : memref<1x128x256xf32, #tpu.memory_space<vmem>>, vector<1x128x256xf32>
    %14 = vector.shape_cast %13 : vector<1x128x256xf32> to vector<128x256xf32>
    %15 = vector.shape_cast %12 : vector<128x256xf32> to vector<1x128x256xf32>
    tpu.vector_store %arg6[%c0_12, %c0_13, %c0_14], %15 {strides = array<i32>} : memref<1x128x256xf32, #tpu.memory_space<vmem>>, vector<1x128x256xf32>,
    return
  }
  func.func @transform_0(%arg0: i32) -> (i32, i32) {
    %c0_i32 = arith.constant 0 : i32
    %c0_i32_0 = arith.constant 0 : i32
    %c0_i32_1 = arith.constant 0 : i32
    return %c0_i32, %c0_i32_0 : i32, i32
  }
  func.func @transform_1(%arg0: i32) -> (i32, i32, i32) {
    %c0_i32 = arith.constant 0 : i32
    %c0_i32_0 = arith.constant 0 : i32
    %c0_i32_1 = arith.constant 0 : i32
    return %arg0, %c0_i32, %c0_i32_0 : i32, i32, i32
  }
  func.func @transform_2(%arg0: i32) -> (i32, i32) {
    %c0_i32 = arith.constant 0 : i32
    %c0_i32_0 = arith.constant 0 : i32
    %c0_i32_1 = arith.constant 0 : i32
    return %c0_i32, %c0_i32_0 : i32, i32
  }
  func.func @transform_3(%arg0: i32) -> (i32, i32) {
    %c0_i32 = arith.constant 0 : i32
    %c0_i32_0 = arith.constant 0 : i32
    %c0_i32_1 = arith.constant 0 : i32
    return %c0_i32, %c0_i32_0 : i32, i32
  }
  func.func @transform_4(%arg0: i32) -> (i32, i32, i32) {
    %c0_i32 = arith.constant 0 : i32
    %c0_i32_0 = arith.constant 0 : i32
    %c0_i32_1 = arith.constant 0 : i32
    return %arg0, %c0_i32, %c0_i32_0 : i32, i32, i32
  }
  func.func @transform_5(%arg0: i32) -> (i32, i32, i32) {
    %c0_i32 = arith.constant 0 : i32
    %c0_i32_0 = arith.constant 0 : i32
    %c0_i32_1 = arith.constant 0 : i32
    return %arg0, %c0_i32, %c0_i32_0 : i32, i32, i32
  }
}

</mosaic_0001>

<llo_original>
// kernel: upblock_forward.1
$region0: #{upblock_forward.1}
  #allocation0 [shape = 'u32[]', space=smem, size = 0x4, offset = 0x4, fixed_abs, tag = 'smem constant byte address 0x4 - core index']
  #allocation1 [shape = 'u32[144,128]{1,0:T(1,128)}', space=vmem, size = 0x12000, scoped, tag = 'internal scratch']
  %s0 = inlined_call_operand.vmem [shape: bf16[128,64], index: 0, kind: input, shape index: {}]
  %s1 = inlined_call_operand.vmem [shape: bf16[2,64,64], index: 1, kind: input, shape index: {}]
  %s2 = inlined_call_operand.vmem [shape: bf16[64,256], index: 2, kind: input, shape index: {}]
  %s3 = inlined_call_operand.vmem [shape: f32[128,1], index: 3, kind: input, shape index: {}]
  %s4 = inlined_call_operand.vmem [shape: f32[2,128,256], index: 4, kind: input, shape index: {}]
  %s5 = inlined_call_operand.vmem [shape: f32[2,128,256], index: 5, kind: output, shape index: {}]
  %s6 = sld [smem:[#allocation0]]
  $region53: #{upblock_forward.1} parent=0
    _
  %s8 = ssub.s32 1, %s6
  %s9 = scalar_select 0, %s8, %s6
  loop: start=0, step=1, limit=4
  $region2: #{upblock_forward.1} parent=0 // loop_pre_header
    _
  $region3: #{upblock_forward.1} parent=0 // loop_header
    %s11 = sphi 0, %s15
    %p12 = scmp.ge.s32.totalorder %s11, 4
    %s19 = sphi 0, %s19
    %s21 = sphi 0, %s19
    %s22 = sphi 0, %s21
    %s36 = sphi 0, %s22
    %s42 = sphi 0, %s44
    %s45 = sphi 0, %s42
    %s46 = sphi 0, %s45
    %s62 = sphi 0, %s46
    %s66 = sphi 0, %s66
    %s68 = sphi 0, %s66
    %s69 = sphi 0, %s68
    %s83 = sphi 0, %s69
    %s87 = sphi 0, %s87
    %s89 = sphi 0, %s87
    %s90 = sphi 0, %s89
    %s104 = sphi 0, %s90
    %s110 = sphi 0, %s112
    %s113 = sphi 0, %s110
    %s114 = sphi 0, %s113
    %s130 = sphi 0, %s114
    %s136 = sphi 0, %s138
    %s139 = sphi 0, %s136
    %s140 = sphi 0, %s139
    %s156 = sphi 0, %s140
  $region4: #{upblock_forward.1} parent=0 // loop_header_branch
    %14 = sbr.rel (%p12) target = $region8
  $region5: #{upblock_forward.1} parent=0 // loop_body
    %s16 = ssub.s32 %s11, 1
    %s17 = ssub.s32 %s11, 2
    %s18 = sadd.s32 %s11, 1
    %s20 = sadd.s32 %s19, 1
    %p23 = scmp.eq.s32.totalorder %s11, 1
    %p24 = scmp.ne.s32.totalorder %s19, %s21
    %p25 = scmp.eq.s32.totalorder %s11, 0
    %p26 = por %p24, %p25
    %p27 = scmp.ne.s32.totalorder %s19, %s21
    %p28 = scmp.eq.s32.totalorder %s16, 1
    %p29 = por %p27, %p28
    %p30 = scmp.ne.s32.totalorder %s21, %s22
    %p31 = scmp.eq.s32.totalorder %s16, 0
    %p32 = por %p30, %p31
    %p33 = scmp.ne.s32.totalorder %s21, %s22
    %p34 = scmp.eq.s32.totalorder %s17, 1
    %p35 = por %p33, %p34
    %p37 = scmp.ne.s32.totalorder %s22, %s36
    %p38 = scmp.eq.s32.totalorder %s17, 0
    %p39 = por %p37, %p38
    %s40 = ssub.s32 %s11, %s18
    %p41 = scmp.eq.s32.totalorder %s40, 0
    %s43 = sadd.s32 %s42, 1
    %s44 = scalar_select %p41, %s42, %s43
    %p47 = pneg %p41
    %p48 = scmp.eq.s32.totalorder %s11, 1
    %p49 = por %p47, %p48
    %p50 = scmp.ne.s32.totalorder %s42, %s45
    %p51 = scmp.eq.s32.totalorder %s11, 0
    %p52 = por %p50, %p51
    %p53 = scmp.ne.s32.totalorder %s42, %s45
    %p54 = scmp.eq.s32.totalorder %s16, 1
    %p55 = por %p53, %p54
    %p56 = scmp.ne.s32.totalorder %s45, %s46
    %p57 = scmp.eq.s32.totalorder %s16, 0
    %p58 = por %p56, %p57
    %p59 = scmp.ne.s32.totalorder %s45, %s46
    %p60 = scmp.eq.s32.totalorder %s17, 1
    %p61 = por %p59, %p60
    %p63 = scmp.ne.s32.totalorder %s46, %s62
    %p64 = scmp.eq.s32.totalorder %s17, 0
    %p65 = por %p63, %p64
    %s67 = sadd.s32 %s66, 1
    %p70 = scmp.eq.s32.totalorder %s11, 1
    %p71 = scmp.ne.s32.totalorder %s66, %s68
    %p72 = scmp.eq.s32.totalorder %s11, 0
    %p73 = por %p71, %p72
    %p74 = scmp.ne.s32.totalorder %s66, %s68
    %p75 = scmp.eq.s32.totalorder %s16, 1
    %p76 = por %p74, %p75
    %p77 = scmp.ne.s32.totalorder %s68, %s69
    %p78 = scmp.eq.s32.totalorder %s16, 0
    %p79 = por %p77, %p78
    %p80 = scmp.ne.s32.totalorder %s68, %s69
    %p81 = scmp.eq.s32.totalorder %s17, 1
    %p82 = por %p80, %p81
    %p84 = scmp.ne.s32.totalorder %s69, %s83
    %p85 = scmp.eq.s32.totalorder %s17, 0
    %p86 = por %p84, %p85
    %s88 = sadd.s32 %s87, 1
    %p91 = scmp.eq.s32.totalorder %s11, 1
    %p92 = scmp.ne.s32.totalorder %s87, %s89
    %p93 = scmp.eq.s32.totalorder %s11, 0
    %p94 = por %p92, %p93
    %p95 = scmp.ne.s32.totalorder %s87, %s89
    %p96 = scmp.eq.s32.totalorder %s16, 1
    %p97 = por %p95, %p96
    %p98 = scmp.ne.s32.totalorder %s89, %s90
    %p99 = scmp.eq.s32.totalorder %s16, 0
    %p100 = por %p98, %p99
    %p101 = scmp.ne.s32.totalorder %s89, %s90
    %p102 = scmp.eq.s32.totalorder %s17, 1
    %p103 = por %p101, %p102
    %p105 = scmp.ne.s32.totalorder %s90, %s104
    %p106 = scmp.eq.s32.totalorder %s17, 0
    %p107 = por %p105, %p106
    %s108 = ssub.s32 %s11, %s18
    %p109 = scmp.eq.s32.totalorder %s108, 0
    %s111 = sadd.s32 %s110, 1
    %s112 = scalar_select %p109, %s110, %s111
    %p115 = pneg %p109
    %p116 = scmp.eq.s32.totalorder %s11, 1
    %p117 = por %p115, %p116
    %p118 = scmp.ne.s32.totalorder %s110, %s113
    %p119 = scmp.eq.s32.totalorder %s11, 0
    %p120 = por %p118, %p119
    %p121 = scmp.ne.s32.totalorder %s110, %s113
    %p122 = scmp.eq.s32.totalorder %s16, 1
    %p123 = por %p121, %p122
    %p124 = scmp.ne.s32.totalorder %s113, %s114
    %p125 = scmp.eq.s32.totalorder %s16, 0
    %p126 = por %p124, %p125
    %p127 = scmp.ne.s32.totalorder %s113, %s114
    %p128 = scmp.eq.s32.totalorder %s17, 1
    %p129 = por %p127, %p128
    %p131 = scmp.ne.s32.totalorder %s114, %s130
    %p132 = scmp.eq.s32.totalorder %s17, 0
    %p133 = por %p131, %p132
    %s134 = ssub.s32 %s11, %s18
    %p135 = scmp.eq.s32.totalorder %s134, 0
    %s137 = sadd.s32 %s136, 1
    %s138 = scalar_select %p135, %s136, %s137
    %p141 = pneg %p135
    %p142 = scmp.eq.s32.totalorder %s11, 1
    %p143 = por %p141, %p142
    %p144 = scmp.ne.s32.totalorder %s136, %s139
    %p145 = scmp.eq.s32.totalorder %s11, 0
    %p146 = por %p144, %p145
    %p147 = scmp.ne.s32.totalorder %s136, %s139
    %p148 = scmp.eq.s32.totalorder %s16, 1
    %p149 = por %p147, %p148
    %p150 = scmp.ne.s32.totalorder %s139, %s140
    %p151 = scmp.eq.s32.totalorder %s16, 0
    %p152 = por %p150, %p151
    %p153 = scmp.ne.s32.totalorder %s139, %s140
    %p154 = scmp.eq.s32.totalorder %s17, 1
    %p155 = por %p153, %p154
    %p157 = scmp.ne.s32.totalorder %s140, %s156
    %p158 = scmp.eq.s32.totalorder %s17, 0
    %p159 = por %p157, %p158
    %p160 = scmp.le.s32.totalorder 1, %s11
    %p161 = scmp.lt.s32.totalorder %s11, 3
    %p162 = pnand %p160, %p161
    %p163 = pneg %p162
    // Predicated region
    $region9: #{upblock_forward.1} parent=5 // pred_check
      _
    $region10: #{upblock_forward.1} parent=5 // pred_check_branch
      %165 = sbr.rel (%p162) target = $region12
    $region11: #{upblock_forward.1} parent=5 // pred_region
      %s166 = ssub.s32 %s11, 1
      // Predicated region
      $region13: #{upblock_forward.1} parent=11 // pred_check
        %p167 = pneg %p32
      $region14: #{upblock_forward.1} parent=11 // pred_check_branch
        %169 = sbr.rel (%p167) target = $region16
      $region15: #{upblock_forward.1} parent=11 // pred_region
        _
      $region16: #{upblock_forward.1} parent=11 // pred_fallthru
        _
      // Predicated region
      $region17: #{upblock_forward.1} parent=11 // pred_check
        %p170 = pneg %p79
      $region18: #{upblock_forward.1} parent=11 // pred_check_branch
        %172 = sbr.rel (%p170) target = $region20
      $region19: #{upblock_forward.1} parent=11 // pred_region
        _
      $region20: #{upblock_forward.1} parent=11 // pred_fallthru
        _
      // Predicated region
      $region21: #{upblock_forward.1} parent=11 // pred_check
        %p173 = pneg %p100
      $region22: #{upblock_forward.1} parent=11 // pred_check_branch
        %175 = sbr.rel (%p173) target = $region24
      $region23: #{upblock_forward.1} parent=11 // pred_region
        _
      $region24: #{upblock_forward.1} parent=11 // pred_fallthru
        _
    $region12: #{upblock_forward.1} parent=5 // pred_fallthru
      _
    %p176 = scmp.lt.s32.totalorder %s11, 2
    // Predicated region
    $region25: #{upblock_forward.1} parent=5 // pred_check
      %p177 = pneg %p176
    $region26: #{upblock_forward.1} parent=5 // pred_check_branch
      %179 = sbr.rel (%p177) target = $region28
    $region27: #{upblock_forward.1} parent=5 // pred_region
      // Predicated region
      $region29: #{upblock_forward.1} parent=27 // pred_check
        %p180 = pneg %p52
      $region30: #{upblock_forward.1} parent=27 // pred_check_branch
        %182 = sbr.rel (%p180) target = $region32
      $region31: #{upblock_forward.1} parent=27 // pred_region
        %p183 = scmp.lt.s32.totalorder %s11, 1
        %s184 = scalar_select %p183, %s11, 1
        %s185 = smul.addr %s184, 8
        %s186 = smul.addr %s185, 4
        %s187 = scalar_lea.vmem %s1, %s186
      $region32: #{upblock_forward.1} parent=27 // pred_fallthru
        _
      // Predicated region
      $region33: #{upblock_forward.1} parent=27 // pred_check
        %p188 = pneg %p120
      $region34: #{upblock_forward.1} parent=27 // pred_check_branch
        %190 = sbr.rel (%p188) target = $region36
      $region35: #{upblock_forward.1} parent=27 // pred_region
        %p191 = scmp.lt.s32.totalorder %s11, 1
        %s192 = scalar_select %p191, %s11, 1
        %s193 = smul.addr %s192, 32
        %s194 = smul.addr %s193, 8
        %s195 = scalar_lea.vmem %s4, %s194
      $region36: #{upblock_forward.1} parent=27 // pred_fallthru
        _
    $region28: #{upblock_forward.1} parent=5 // pred_fallthru
      _
    %p196 = scmp.le.s32.totalorder 1, %s11
    %p197 = scmp.lt.s32.totalorder %s11, 3
    %p198 = pnand %p196, %p197
    %p199 = pneg %p198
    // Predicated region
    $region37: #{upblock_forward.1} parent=5 // pred_check
      _
    $region38: #{upblock_forward.1} parent=5 // pred_check_branch
      %201 = sbr.rel (%p198) target = $region40
    $region39: #{upblock_forward.1} parent=5 // pred_region
      %s202 = ssub.s32 %s11, 1
      %p203 = pneg %p32
      %p204 = pneg %p29
      %p205 = scmp.lt.s32.totalorder %s16, 1
      %s206 = scalar_select %p205, %s16, 1
      %s207 = smul.addr %s206, 8
      %s208 = smul.addr %s207, 4
      %s209 = scalar_lea.vmem %s1, %s208
      %p210 = pneg %p58
      %p211 = pneg %p55
      %p212 = pneg %p79
      %p213 = pneg %p76
      %p214 = pneg %p100
      %p215 = pneg %p97
      %p216 = scmp.lt.s32.totalorder %s16, 1
      %s217 = scalar_select %p216, %s16, 1
      %s218 = smul.addr %s217, 32
      %s219 = smul.addr %s218, 8
      %s220 = scalar_lea.vmem %s4, %s219
      %p221 = pneg %p126
      %p222 = pneg %p123
      %p223 = pneg %p152
      %p224 = pneg %p149
      %p225 = scmp.lt.s32.totalorder %s16, 1
      %s226 = scalar_select %p225, %s16, 1
      %s227 = smul.addr %s226, 32
      %s228 = smul.addr %s227, 8
      %s229 = scalar_lea.vmem %s5, %s228
      %p230 = scmp.lt.s32.totalorder %s16, 1
      %s231 = scalar_select %p230, %s16, 1
      %s232 = smul.addr %s231, 8
      %s233 = smul.addr %s232, 4
      %s234 = scalar_lea.vmem %s1, %s233
      %p235 = scmp.lt.s32.totalorder %s16, 1
      %s236 = scalar_select %p235, %s16, 1
      %s237 = smul.addr %s236, 32
      %s238 = smul.addr %s237, 8
      %s239 = scalar_lea.vmem %s4, %s238
      %p240 = scmp.lt.s32.totalorder %s16, 1
      %s241 = scalar_select %p240, %s16, 1
      %s242 = smul.addr %s241, 32
      %s243 = smul.addr %s242, 8
      %s244 = scalar_lea.vmem %s5, %s243
      %v246 = vld [vmem:[%s0] sm:$0xf]
      %v247 = vld [vmem:[%s0 + $0x4] sm:$0xf]
      %v248 = vld [vmem:[%s0 + $0x8] sm:$0xf]
      %v249 = vld [vmem:[%s0 + $0xc] sm:$0xf]
      %v250 = vld [vmem:[%s0 + $0x10] sm:$0xf]
      %v251 = vld [vmem:[%s0 + $0x14] sm:$0xf]
      %v252 = vld [vmem:[%s0 + $0x18] sm:$0xf]
      %v253 = vld [vmem:[%s0 + $0x1c] sm:$0xf]
      %v254 = vld [vmem:[%s0 + $0x20] sm:$0xf]
      %v255 = vld [vmem:[%s0 + $0x24] sm:$0xf]
      %v256 = vld [vmem:[%s0 + $0x28] sm:$0xf]
      %v257 = vld [vmem:[%s0 + $0x2c] sm:$0xf]
      %v258 = vld [vmem:[%s0 + $0x30] sm:$0xf]
      %v259 = vld [vmem:[%s0 + $0x34] sm:$0xf]
      %v260 = vld [vmem:[%s0 + $0x38] sm:$0xf]
      %v261 = vld [vmem:[%s0 + $0x3c] sm:$0xf]
      %v262 = vld [vmem:[%s234] sm:$0xf]
      %v263 = vld [vmem:[%s234 + $0x4] sm:$0xf]
      %v264 = vld [vmem:[%s234 + $0x8] sm:$0xf]
      %v265 = vld [vmem:[%s234 + $0xc] sm:$0xf]
      %v266 = vld [vmem:[%s234 + $0x10] sm:$0xf]
      %v267 = vld [vmem:[%s234 + $0x14] sm:$0xf]
      %v268 = vld [vmem:[%s234 + $0x18] sm:$0xf]
      %v269 = vld [vmem:[%s234 + $0x1c] sm:$0xf]
      %v286 = vunpack.c.l.b16 %v246
      %v287 = vunpack.c.l.b16 %v247
      %v288 = vunpack.c.l.b16 %v248
      %v289 = vunpack.c.l.b16 %v249
      %v290 = vunpack.c.l.b16 %v250
      %v291 = vunpack.c.l.b16 %v251
      %v292 = vunpack.c.l.b16 %v252
      %v293 = vunpack.c.l.b16 %v253
      %v294 = vunpack.c.l.b16 %v254
      %v295 = vunpack.c.l.b16 %v255
      %v296 = vunpack.c.l.b16 %v256
      %v297 = vunpack.c.l.b16 %v257
      %v298 = vunpack.c.l.b16 %v258
      %v299 = vunpack.c.l.b16 %v259
      %v300 = vunpack.c.l.b16 %v260
      %v301 = vunpack.c.l.b16 %v261
      %v302 = vpack.c.b16 %v287, %v286
      %v303 = vpack.c.b16 %v289, %v288
      %v304 = vpack.c.b16 %v291, %v290
      %v305 = vpack.c.b16 %v293, %v292
      %v306 = vpack.c.b16 %v295, %v294
      %v307 = vpack.c.b16 %v297, %v296
      %v308 = vpack.c.b16 %v299, %v298
      %v309 = vpack.c.b16 %v301, %v300
      %v318 = vunpack.c.l.b16 %v262
      %v319 = vunpack.c.l.b16 %v263
      %v320 = vunpack.c.l.b16 %v264
      %v321 = vunpack.c.l.b16 %v265
      %v322 = vunpack.c.l.b16 %v266
      %v323 = vunpack.c.l.b16 %v267
      %v324 = vunpack.c.l.b16 %v268
      %v325 = vunpack.c.l.b16 %v269
      %v326 = vpack.c.b16 %v319, %v318
      %v327 = vpack.c.b16 %v321, %v320
      %v328 = vpack.c.b16 %v323, %v322
      %v329 = vpack.c.b16 %v325, %v324
      %vm334 = vcmask 523264
      %v336 = vsel %vm334, %v302, 0
      %v339 = vsel %vm334, %v303, 0
      %v342 = vsel %vm334, %v304, 0
      %v345 = vsel %vm334, %v305, 0
      %v348 = vsel %vm334, %v306, 0
      %v351 = vsel %vm334, %v307, 0
      %v354 = vsel %vm334, %v308, 0
      %v357 = vsel %vm334, %v309, 0
      %359 = vmatprep.subr.bf16.mxu0 0
      %360 = vmatpush1.bf16.msra.mxu0 %v326
      %361 = vmatprep.subr.bf16.mxu0 0
      %362 = vmatpush1.bf16.msra.mxu0 %v327
      %363 = vmatprep.subr.bf16.mxu0 0
      %364 = vmatpush1.bf16.msra.mxu0 %v328
      %365 = vmatprep.subr.bf16.mxu0 0
      %366 = vmatpush1.bf16.msra.mxu0 %v329
      %367 = vmatprep.subr.bf16.mxu0 0
      %368 = vmatpush1.bf16.msra.mxu0 0
      %369 = vmatprep.subr.bf16.mxu0 0
      %370 = vmatpush1.bf16.msra.mxu0 0
      %371 = vmatprep.subr.bf16.mxu0 0
      %372 = vmatpush1.bf16.msra.mxu0 0
      %373 = vmatprep.subr.bf16.mxu0 0
      %374 = vmatpush1.bf16.msra.mxu0 0
      %375 = vmatprep.subr.bf16.mxu0 0
      %376 = vmatpush1.bf16.msra.mxu0 0
      %377 = vmatprep.subr.bf16.mxu0 0
      %378 = vmatpush1.bf16.msra.mxu0 0
      %379 = vmatprep.subr.bf16.mxu0 0
      %380 = vmatpush1.bf16.msra.mxu0 0
      %381 = vmatprep.subr.bf16.mxu0 0
      %382 = vmatpush1.bf16.msra.mxu0 0
      %383 = vmatprep.subr.bf16.mxu0 0
      %384 = vmatpush1.bf16.msra.mxu0 0
      %385 = vmatprep.subr.bf16.mxu0 0
      %386 = vmatpush1.bf16.msra.mxu0 0
      %387 = vmatprep.subr.bf16.mxu0 0
      %388 = vmatpush1.bf16.msra.mxu0 0
      %389 = vmatprep.subr.bf16.mxu0 0
      %390 = vmatpush1.bf16.msra.mxu0 0
      %391 = vmatprep.mubr.bf16.mxu0 0
      %392 = vmatmul.mubr.bf16.gmra.mrb[0].mxu0 %v336
      %v393 = vpop.f32.mrb[0].mxu0
      %v394 = vadd.f32 0.0, %v393
      %v395 = vpop.f32.mrb[0].mxu0
      %v396 = vpop.f32.mrb[0].mxu0
      %v397 = vadd.f32 0.0, %v396
      %v398 = vpop.f32.mrb[0].mxu0
      %399 = vmatprep.mubr.bf16.mxu0 0
      %400 = vmatmul.mubr.bf16.gmra.mrb[0].mxu0 %v339
      %v401 = vpop.f32.mrb[0].mxu0
      %v402 = vadd.f32 0.0, %v401
      %v403 = vpop.f32.mrb[0].mxu0
      %v404 = vpop.f32.mrb[0].mxu0
      %v405 = vadd.f32 0.0, %v404
      %v406 = vpop.f32.mrb[0].mxu0
      %407 = vmatprep.mubr.bf16.mxu0 0
      %408 = vmatmul.mubr.bf16.gmra.mrb[0].mxu0 %v342
      %v409 = vpop.f32.mrb[0].mxu0
      %v410 = vadd.f32 0.0, %v409
      %v411 = vpop.f32.mrb[0].mxu0
      %v412 = vpop.f32.mrb[0].mxu0
      %v413 = vadd.f32 0.0, %v412
      %v414 = vpop.f32.mrb[0].mxu0
      %415 = vmatprep.mubr.bf16.mxu0 0
      %416 = vmatmul.mubr.bf16.gmra.mrb[0].mxu0 %v345
      %v417 = vpop.f32.mrb[0].mxu0
      %v418 = vadd.f32 0.0, %v417
      %v419 = vpop.f32.mrb[0].mxu0
      %v420 = vpop.f32.mrb[0].mxu0
      %v421 = vadd.f32 0.0, %v420
      %v422 = vpop.f32.mrb[0].mxu0
      %423 = vmatprep.mubr.bf16.mxu0 0
      %424 = vmatmul.mubr.bf16.gmra.mrb[0].mxu0 %v348
      %v425 = vpop.f32.mrb[0].mxu0
      %v426 = vadd.f32 0.0, %v425
      %v427 = vpop.f32.mrb[0].mxu0
      %v428 = vpop.f32.mrb[0].mxu0
      %v429 = vadd.f32 0.0, %v428
      %v430 = vpop.f32.mrb[0].mxu0
      %431 = vmatprep.mubr.bf16.mxu0 0
      %432 = vmatmul.mubr.bf16.gmra.mrb[0].mxu0 %v351
      %v433 = vpop.f32.mrb[0].mxu0
      %v434 = vadd.f32 0.0, %v433
      %v435 = vpop.f32.mrb[0].mxu0
      %v436 = vpop.f32.mrb[0].mxu0
      %v437 = vadd.f32 0.0, %v436
      %v438 = vpop.f32.mrb[0].mxu0
      %439 = vmatprep.mubr.bf16.mxu0 0
      %440 = vmatmul.mubr.bf16.gmra.mrb[0].mxu0 %v354
      %v441 = vpop.f32.mrb[0].mxu0
      %v442 = vadd.f32 0.0, %v441
      %v443 = vpop.f32.mrb[0].mxu0
      %v444 = vpop.f32.mrb[0].mxu0
      %v445 = vadd.f32 0.0, %v444
      %v446 = vpop.f32.mrb[0].mxu0
      %447 = vmatprep.mubr.bf16.mxu0 0
      %448 = vmatmul.mubr.bf16.gmra.mrb[0].mxu0 %v357
      %v449 = vpop.f32.mrb[0].mxu0
      %v450 = vadd.f32 0.0, %v449
      %v451 = vpop.f32.mrb[0].mxu0
      %v452 = vpop.f32.mrb[0].mxu0
      %v453 = vadd.f32 0.0, %v452
      %v454 = vpop.f32.mrb[0].mxu0
      %455 = vdwg.mxu0
      %v456 = vpack.c.bf16 %v397, %v394
      %v457 = vpack.c.bf16 %v405, %v402
      %v458 = vpack.c.bf16 %v413, %v410
      %v459 = vpack.c.bf16 %v421, %v418
      %v460 = vpack.c.bf16 %v429, %v426
      %v461 = vpack.c.bf16 %v437, %v434
      %v462 = vpack.c.bf16 %v445, %v442
      %v463 = vpack.c.bf16 %v453, %v450
      %v464 = vld [vmem:[%s2] sm:$0xff]
      %v465 = vld [vmem:[%s2 + $0x8] sm:$0xff]
      %v466 = vld [vmem:[%s2 + $0x10] sm:$0xff]
      %v467 = vld [vmem:[%s2 + $0x18] sm:$0xff]
      %v468 = vld [vmem:[%s2 + $0x20] sm:$0xff]
      %v469 = vld [vmem:[%s2 + $0x28] sm:$0xff]
      %v470 = vld [vmem:[%s2 + $0x30] sm:$0xff]
      %v471 = vld [vmem:[%s2 + $0x38] sm:$0xff]
      %v472 = vld [vmem:[%s3] sm:$0xff]
      %v473 = vld [vmem:[%s3 + $0x8] sm:$0xff]
      %v474 = vld [vmem:[%s3 + $0x10] sm:$0xff]
      %v475 = vld [vmem:[%s3 + $0x18] sm:$0xff]
      %v476 = vld [vmem:[%s3 + $0x20] sm:$0xff]
      %v477 = vld [vmem:[%s3 + $0x28] sm:$0xff]
      %v478 = vld [vmem:[%s3 + $0x30] sm:$0xff]
      %v479 = vld [vmem:[%s3 + $0x38] sm:$0xff]
      %v480 = vld [vmem:[%s3 + $0x40] sm:$0xff]
      %v481 = vld [vmem:[%s3 + $0x48] sm:$0xff]
      %v482 = vld [vmem:[%s3 + $0x50] sm:$0xff]
      %v483 = vld [vmem:[%s3 + $0x58] sm:$0xff]
      %v484 = vld [vmem:[%s3 + $0x60] sm:$0xff]
      %v485 = vld [vmem:[%s3 + $0x68] sm:$0xff]
      %v486 = vld [vmem:[%s3 + $0x70] sm:$0xff]
      %v487 = vld [vmem:[%s3 + $0x78] sm:$0xff]
      %489 = vset.pattern.permute.xlu0 0
      %490 = vperm.xlu0 %489, %v472
      %v491 = vpop.permute.xlu0 %490
      %494 = vset.pattern.permute.xlu0 0
      %495 = vperm.xlu0 %494, %v473
      %v496 = vpop.permute.xlu0 %495
      %499 = vset.pattern.permute.xlu0 0
      %500 = vperm.xlu0 %499, %v474
      %v501 = vpop.permute.xlu0 %500
      %504 = vset.pattern.permute.xlu0 0
      %505 = vperm.xlu0 %504, %v475
      %v506 = vpop.permute.xlu0 %505
      %509 = vset.pattern.permute.xlu0 0
      %510 = vperm.xlu0 %509, %v476
      %v511 = vpop.permute.xlu0 %510
      %514 = vset.pattern.permute.xlu0 0
      %515 = vperm.xlu0 %514, %v477
      %v516 = vpop.permute.xlu0 %515
      %519 = vset.pattern.permute.xlu0 0
      %520 = vperm.xlu0 %519, %v478
      %v521 = vpop.permute.xlu0 %520
      %524 = vset.pattern.permute.xlu0 0
      %525 = vperm.xlu0 %524, %v479
      %v526 = vpop.permute.xlu0 %525
      %529 = vset.pattern.permute.xlu0 0
      %530 = vperm.xlu0 %529, %v480
      %v531 = vpop.permute.xlu0 %530
      %534 = vset.pattern.permute.xlu0 0
      %535 = vperm.xlu0 %534, %v481
      %v536 = vpop.permute.xlu0 %535
      %539 = vset.pattern.permute.xlu0 0
      %540 = vperm.xlu0 %539, %v482
      %v541 = vpop.permute.xlu0 %540
      %544 = vset.pattern.permute.xlu0 0
      %545 = vperm.xlu0 %544, %v483
      %v546 = vpop.permute.xlu0 %545
      %549 = vset.pattern.permute.xlu0 0
      %550 = vperm.xlu0 %549, %v484
      %v551 = vpop.permute.xlu0 %550
      %554 = vset.pattern.permute.xlu0 0
      %555 = vperm.xlu0 %554, %v485
      %v556 = vpop.permute.xlu0 %555
      %559 = vset.pattern.permute.xlu0 0
      %560 = vperm.xlu0 %559, %v486
      %v561 = vpop.permute.xlu0 %560
      %564 = vset.pattern.permute.xlu0 0
      %565 = vperm.xlu0 %564, %v487
      %v566 = vpop.permute.xlu0 %565
      %v576 = vunpack.c.l.b16 %v464
      %v577 = vunpack.c.h.b16 %v464
      %v578 = vunpack.c.l.b16 %v465
      %v579 = vunpack.c.h.b16 %v465
      %v580 = vunpack.c.l.b16 %v466
      %v581 = vunpack.c.h.b16 %v466
      %v582 = vunpack.c.l.b16 %v467
      %v583 = vunpack.c.h.b16 %v467
      %v584 = vunpack.c.l.b16 %v468
      %v585 = vunpack.c.h.b16 %v468
      %v586 = vunpack.c.l.b16 %v469
      %v587 = vunpack.c.h.b16 %v469
      %v588 = vunpack.c.l.b16 %v470
      %v589 = vunpack.c.h.b16 %v470
      %v590 = vunpack.c.l.b16 %v471
      %v591 = vunpack.c.h.b16 %v471
      %v592 = vpack.c.b16 %v578, %v576
      %v593 = vpack.c.b16 %v579, %v577
      %v594 = vpack.c.b16 %v582, %v580
      %v595 = vpack.c.b16 %v583, %v581
      %v596 = vpack.c.b16 %v586, %v584
      %v597 = vpack.c.b16 %v587, %v585
      %v598 = vpack.c.b16 %v590, %v588
      %v599 = vpack.c.b16 %v591, %v589
      %v609 = vsel %vm334, %v456, 0
      %v612 = vsel %vm334, %v457, 0
      %v615 = vsel %vm334, %v458, 0
      %v618 = vsel %vm334, %v459, 0
      %v621 = vsel %vm334, %v460, 0
      %v624 = vsel %vm334, %v461, 0
      %v627 = vsel %vm334, %v462, 0
      %v630 = vsel %vm334, %v463, 0
      %632 = vmatprep.subr.bf16.mxu0 %v593
      %633 = vmatpush1.bf16.msra.mxu0 %v592
      %634 = vmatprep.subr.bf16.mxu0 %v595
      %635 = vmatpush1.bf16.msra.mxu0 %v594
      %636 = vmatprep.subr.bf16.mxu0 %v597
      %637 = vmatpush1.bf16.msra.mxu0 %v596
      %638 = vmatprep.subr.bf16.mxu0 %v599
      %639 = vmatpush1.bf16.msra.mxu0 %v598
      %640 = vmatprep.subr.bf16.mxu0 0
      %641 = vmatpush1.bf16.msra.mxu0 0
      %642 = vmatprep.subr.bf16.mxu0 0
      %643 = vmatpush1.bf16.msra.mxu0 0
      %644 = vmatprep.subr.bf16.mxu0 0
      %645 = vmatpush1.bf16.msra.mxu0 0
      %646 = vmatprep.subr.bf16.mxu0 0
      %647 = vmatpush1.bf16.msra.mxu0 0
      %648 = vmatprep.subr.bf16.mxu0 0
      %649 = vmatpush1.bf16.msra.mxu0 0
      %650 = vmatprep.subr.bf16.mxu0 0
      %651 = vmatpush1.bf16.msra.mxu0 0
      %652 = vmatprep.subr.bf16.mxu0 0
      %653 = vmatpush1.bf16.msra.mxu0 0
      %654 = vmatprep.subr.bf16.mxu0 0
      %655 = vmatpush1.bf16.msra.mxu0 0
      %656 = vmatprep.subr.bf16.mxu0 0
      %657 = vmatpush1.bf16.msra.mxu0 0
      %658 = vmatprep.subr.bf16.mxu0 0
      %659 = vmatpush1.bf16.msra.mxu0 0
      %660 = vmatprep.subr.bf16.mxu0 0
      %661 = vmatpush1.bf16.msra.mxu0 0
      %662 = vmatprep.subr.bf16.mxu0 0
      %663 = vmatpush1.bf16.msra.mxu0 0
      %664 = vmatprep.mubr.bf16.mxu0 0
      %665 = vmatmul.mubr.bf16.gmra.mrb[0].mxu0 %v609
      %v666 = vpop.f32.mrb[0].mxu0
      %v667 = vadd.f32 %v491, %v666
      %v668 = vpop.f32.mrb[0].mxu0
      %v669 = vadd.f32 %v491, %v668
      %v670 = vpop.f32.mrb[0].mxu0
      %v671 = vadd.f32 %v496, %v670
      %v672 = vpop.f32.mrb[0].mxu0
      %v673 = vadd.f32 %v496, %v672
      %674 = vmatprep.mubr.bf16.mxu0 0
      %675 = vmatmul.mubr.bf16.gmra.mrb[0].mxu0 %v612
      %v676 = vpop.f32.mrb[0].mxu0
      %v677 = vadd.f32 %v501, %v676
      %v678 = vpop.f32.mrb[0].mxu0
      %v679 = vadd.f32 %v501, %v678
      %v680 = vpop.f32.mrb[0].mxu0
      %v681 = vadd.f32 %v506, %v680
      %v682 = vpop.f32.mrb[0].mxu0
      %v683 = vadd.f32 %v506, %v682
      %684 = vmatprep.mubr.bf16.mxu0 0
      %685 = vmatmul.mubr.bf16.gmra.mrb[0].mxu0 %v615
      %v686 = vpop.f32.mrb[0].mxu0
      %v687 = vadd.f32 %v511, %v686
      %v688 = vpop.f32.mrb[0].mxu0
      %v689 = vadd.f32 %v511, %v688
      %v690 = vpop.f32.mrb[0].mxu0
      %v691 = vadd.f32 %v516, %v690
      %v692 = vpop.f32.mrb[0].mxu0
      %v693 = vadd.f32 %v516, %v692
      %694 = vmatprep.mubr.bf16.mxu0 0
      %695 = vmatmul.mubr.bf16.gmra.mrb[0].mxu0 %v618
      %v696 = vpop.f32.mrb[0].mxu0
      %v697 = vadd.f32 %v521, %v696
      %v698 = vpop.f32.mrb[0].mxu0
      %v699 = vadd.f32 %v521, %v698
      %v700 = vpop.f32.mrb[0].mxu0
      %v701 = vadd.f32 %v526, %v700
      %v702 = vpop.f32.mrb[0].mxu0
      %v703 = vadd.f32 %v526, %v702
      %704 = vmatprep.mubr.bf16.mxu0 0
      %705 = vmatmul.mubr.bf16.gmra.mrb[0].mxu0 %v621
      %v706 = vpop.f32.mrb[0].mxu0
      %v707 = vadd.f32 %v531, %v706
      %v708 = vpop.f32.mrb[0].mxu0
      %v709 = vadd.f32 %v531, %v708
      %v710 = vpop.f32.mrb[0].mxu0
      %v711 = vadd.f32 %v536, %v710
      %v712 = vpop.f32.mrb[0].mxu0
      %v713 = vadd.f32 %v536, %v712
      %714 = vmatprep.mubr.bf16.mxu0 0
      %715 = vmatmul.mubr.bf16.gmra.mrb[0].mxu0 %v624
      %v716 = vpop.f32.mrb[0].mxu0
      %v717 = vadd.f32 %v541, %v716
      %v718 = vpop.f32.mrb[0].mxu0
      %v719 = vadd.f32 %v541, %v718
      %v720 = vpop.f32.mrb[0].mxu0
      %v721 = vadd.f32 %v546, %v720
      %v722 = vpop.f32.mrb[0].mxu0
      %v723 = vadd.f32 %v546, %v722
      %724 = vmatprep.mubr.bf16.mxu0 0
      %725 = vmatmul.mubr.bf16.gmra.mrb[0].mxu0 %v627
      %v726 = vpop.f32.mrb[0].mxu0
      %v727 = vadd.f32 %v551, %v726
      %v728 = vpop.f32.mrb[0].mxu0
      %v729 = vadd.f32 %v551, %v728
      %v730 = vpop.f32.mrb[0].mxu0
      %v731 = vadd.f32 %v556, %v730
      %v732 = vpop.f32.mrb[0].mxu0
      %v733 = vadd.f32 %v556, %v732
      %734 = vmatprep.mubr.bf16.mxu0 0
      %735 = vmatmul.mubr.bf16.gmra.mrb[0].mxu0 %v630
      %v736 = vpop.f32.mrb[0].mxu0
      %v737 = vadd.f32 %v561, %v736
      %v738 = vpop.f32.mrb[0].mxu0
      %v739 = vadd.f32 %v561, %v738
      %v740 = vpop.f32.mrb[0].mxu0
      %v741 = vadd.f32 %v566, %v740
      %v742 = vpop.f32.mrb[0].mxu0
      %v743 = vadd.f32 %v566, %v742
      %744 = vdwg.mxu0
      %v745 = vld [vmem:[%s239] sm:$0xff]
      %v746 = vld [vmem:[%s239 + $0x8] sm:$0xff]
      %v747 = vld [vmem:[%s239 + $0x10] sm:$0xff]
      %v748 = vld [vmem:[%s239 + $0x18] sm:$0xff]
      %v749 = vld [vmem:[%s239 + $0x20] sm:$0xff]
      %v750 = vld [vmem:[%s239 + $0x28] sm:$0xff]
      %v751 = vld [vmem:[%s239 + $0x30] sm:$0xff]
      %v752 = vld [vmem:[%s239 + $0x38] sm:$0xff]
      %v753 = vld [vmem:[%s239 + $0x40] sm:$0xff]
      %v754 = vld [vmem:[%s239 + $0x48] sm:$0xff]
      %v755 = vld [vmem:[%s239 + $0x50] sm:$0xff]
      %v756 = vld [vmem:[%s239 + $0x58] sm:$0xff]
      %v757 = vld [vmem:[%s239 + $0x60] sm:$0xff]
      %v758 = vld [vmem:[%s239 + $0x68] sm:$0xff]
      %v759 = vld [vmem:[%s239 + $0x70] sm:$0xff]
      %v760 = vld [vmem:[%s239 + $0x78] sm:$0xff]
      %v761 = vld [vmem:[%s239 + $0x80] sm:$0xff]
      %v762 = vld [vmem:[%s239 + $0x88] sm:$0xff]
      %v763 = vld [vmem:[%s239 + $0x90] sm:$0xff]
      %v764 = vld [vmem:[%s239 + $0x98] sm:$0xff]
      %v765 = vld [vmem:[%s239 + $0xa0] sm:$0xff]
      %v766 = vld [vmem:[%s239 + $0xa8] sm:$0xff]
      %v767 = vld [vmem:[%s239 + $0xb0] sm:$0xff]
      %v768 = vld [vmem:[%s239 + $0xb8] sm:$0xff]
      %v769 = vld [vmem:[%s239 + $0xc0] sm:$0xff]
      %v770 = vld [vmem:[%s239 + $0xc8] sm:$0xff]
      %v771 = vld [vmem:[%s239 + $0xd0] sm:$0xff]
      %v772 = vld [vmem:[%s239 + $0xd8] sm:$0xff]
      %v773 = vld [vmem:[%s239 + $0xe0] sm:$0xff]
      %v774 = vld [vmem:[%s239 + $0xe8] sm:$0xff]
      %v775 = vld [vmem:[%s239 + $0xf0] sm:$0xff]
      %v776 = vld [vmem:[%s239 + $0xf8] sm:$0xff]
      %v777 = vadd.f32 %v667, %v745
      %v778 = vadd.f32 %v669, %v746
      %v779 = vadd.f32 %v671, %v747
      %v780 = vadd.f32 %v673, %v748
      %v781 = vadd.f32 %v677, %v749
      %v782 = vadd.f32 %v679, %v750
      %v783 = vadd.f32 %v681, %v751
      %v784 = vadd.f32 %v683, %v752
      %v785 = vadd.f32 %v687, %v753
      %v786 = vadd.f32 %v689, %v754
      %v787 = vadd.f32 %v691, %v755
      %v788 = vadd.f32 %v693, %v756
      %v789 = vadd.f32 %v697, %v757
      %v790 = vadd.f32 %v699, %v758
      %v791 = vadd.f32 %v701, %v759
      %v792 = vadd.f32 %v703, %v760
      %v793 = vadd.f32 %v707, %v761
      %v794 = vadd.f32 %v709, %v762
      %v795 = vadd.f32 %v711, %v763
      %v796 = vadd.f32 %v713, %v764
      %v797 = vadd.f32 %v717, %v765
      %v798 = vadd.f32 %v719, %v766
      %v799 = vadd.f32 %v721, %v767
      %v800 = vadd.f32 %v723, %v768
      %v801 = vadd.f32 %v727, %v769
      %v802 = vadd.f32 %v729, %v770
      %v803 = vadd.f32 %v731, %v771
      %v804 = vadd.f32 %v733, %v772
      %v805 = vadd.f32 %v737, %v773
      %v806 = vadd.f32 %v739, %v774
      %v807 = vadd.f32 %v741, %v775
      %v808 = vadd.f32 %v743, %v776
      %809 = vst [vmem:[%s244] sm:$0xff] %v777
      %810 = vst [vmem:[%s244 + $0x8] sm:$0xff] %v778
      %811 = vst [vmem:[%s244 + $0x10] sm:$0xff] %v779
      %812 = vst [vmem:[%s244 + $0x18] sm:$0xff] %v780
      %813 = vst [vmem:[%s244 + $0x20] sm:$0xff] %v781
      %814 = vst [vmem:[%s244 + $0x28] sm:$0xff] %v782
      %815 = vst [vmem:[%s244 + $0x30] sm:$0xff] %v783
      %816 = vst [vmem:[%s244 + $0x38] sm:$0xff] %v784
      %817 = vst [vmem:[%s244 + $0x40] sm:$0xff] %v785
      %818 = vst [vmem:[%s244 + $0x48] sm:$0xff] %v786
      %819 = vst [vmem:[%s244 + $0x50] sm:$0xff] %v787
      %820 = vst [vmem:[%s244 + $0x58] sm:$0xff] %v788
      %821 = vst [vmem:[%s244 + $0x60] sm:$0xff] %v789
      %822 = vst [vmem:[%s244 + $0x68] sm:$0xff] %v790
      %823 = vst [vmem:[%s244 + $0x70] sm:$0xff] %v791
      %824 = vst [vmem:[%s244 + $0x78] sm:$0xff] %v792
      %825 = vst [vmem:[%s244 + $0x80] sm:$0xff] %v793
      %826 = vst [vmem:[%s244 + $0x88] sm:$0xff] %v794
      %827 = vst [vmem:[%s244 + $0x90] sm:$0xff] %v795
      %828 = vst [vmem:[%s244 + $0x98] sm:$0xff] %v796
      %829 = vst [vmem:[%s244 + $0xa0] sm:$0xff] %v797
      %830 = vst [vmem:[%s244 + $0xa8] sm:$0xff] %v798
      %831 = vst [vmem:[%s244 + $0xb0] sm:$0xff] %v799
      %832 = vst [vmem:[%s244 + $0xb8] sm:$0xff] %v800
      %833 = vst [vmem:[%s244 + $0xc0] sm:$0xff] %v801
      %834 = vst [vmem:[%s244 + $0xc8] sm:$0xff] %v802
      %835 = vst [vmem:[%s244 + $0xd0] sm:$0xff] %v803
      %836 = vst [vmem:[%s244 + $0xd8] sm:$0xff] %v804
      %837 = vst [vmem:[%s244 + $0xe0] sm:$0xff] %v805
      %838 = vst [vmem:[%s244 + $0xe8] sm:$0xff] %v806
      %839 = vst [vmem:[%s244 + $0xf0] sm:$0xff] %v807
      %840 = vst [vmem:[%s244 + $0xf8] sm:$0xff] %v808
      %p841 = scmp.lt.s32.totalorder %s16, 1
      %s842 = scalar_select %p841, %s16, 1
      %s843 = smul.addr %s842, 32
      %s844 = smul.addr %s843, 8
      %s845 = scalar_lea.vmem %s5, %s844
      // Predicated region
      $region41: #{upblock_forward.1} parent=39 // pred_check
        %p846 = pneg %p149
      $region42: #{upblock_forward.1} parent=39 // pred_check_branch
        %848 = sbr.rel (%p846) target = $region44
      $region43: #{upblock_forward.1} parent=39 // pred_region
        _
      $region44: #{upblock_forward.1} parent=39 // pred_fallthru
        _
    $region40: #{upblock_forward.1} parent=5 // pred_fallthru
      _
    %p849 = scmp.le.s32.totalorder 2, %s11
    // Predicated region
    $region45: #{upblock_forward.1} parent=5 // pred_check
      %p850 = pneg %p849
    $region46: #{upblock_forward.1} parent=5 // pred_check_branch
      %852 = sbr.rel (%p850) target = $region48
    $region47: #{upblock_forward.1} parent=5 // pred_region
      %s853 = ssub.s32 %s11, 2
      // Predicated region
      $region49: #{upblock_forward.1} parent=47 // pred_check
        %p854 = pneg %p155
      $region50: #{upblock_forward.1} parent=47 // pred_check_branch
        %856 = sbr.rel (%p854) target = $region52
      $region51: #{upblock_forward.1} parent=47 // pred_region
        %p857 = scmp.lt.s32.totalorder %s17, 1
        %s858 = scalar_select %p857, %s17, 1
        %s859 = smul.addr %s858, 32
        %s860 = smul.addr %s859, 8
        %s861 = scalar_lea.vmem %s5, %s860
      $region52: #{upblock_forward.1} parent=47 // pred_fallthru
        _
    $region48: #{upblock_forward.1} parent=5 // pred_fallthru
      _
  $region6: #{upblock_forward.1} parent=0 // loop_footer
    %s15 = sadd.s32 1, %s11
  $region7: #{upblock_forward.1} parent=0 // loop_footer_branch
    %10 = sbr.rel target = $region3
  $region8: #{upblock_forward.1} parent=0 // loop_exit
    _

</llo_original>
